<compile_context>
chip_gen: v5e
topology: v5e:2x2
jax: 0.10.0
libtpu: 0.0.40
codegen_flags: <defaults>
</compile_context>

<pallas_src>
import jax
import jax.numpy as jnp
from jax.experimental import pallas as pl
from jax.experimental.pallas import tpu as pltpu


def _linear_kernel(w_ref, b_ref, x_ref, o_ref):
    # w_ref: SMEM (3,) f32   -- the three weights of nn.Linear(3, 1)
    # b_ref: SMEM (1,) f32   -- the bias
    # x_ref: VMEM (3, TILE_B) f32, batch on the lane axis
    # o_ref: VMEM (1, TILE_B) f32, lane-dense output
    w0 = w_ref[0]
    w1 = w_ref[1]
    w2 = w_ref[2]
    b = b_ref[0]
    # Three VPU FMAs + bias broadcast; no MXU, no XLU reduction.
    y = w0 * x_ref[0:1, :] + w1 * x_ref[1:2, :] + w2 * x_ref[2:3, :] + b
    o_ref[...] = y.astype(o_ref.dtype)


def multivariate_linear_regression(x, weight, bias, *, tile_b=512):
    """x: (B, 3) f32; weight: (1, 3) f32 (PyTorch layout); bias: (1,) f32.

    Returns (B, 1) f32, identical to torch.nn.Linear(3, 1)(x).
    """
    B, F = x.shape
    assert F == 3, "model is nn.Linear(3, 1)"

    x = x.astype(jnp.float32)
    w = weight.reshape(-1).astype(jnp.float32)   # (3,)
    b = bias.reshape(-1).astype(jnp.float32)     # (1,)

    LANE = 128
    # Pad batch up to a lane multiple, pick a tile, then re-pad to the tile.
    padded_b = pl.cdiv(B, LANE) * LANE
    tile_b = min(tile_b, padded_b)
    padded_b = pl.cdiv(padded_b, tile_b) * tile_b
    n_tiles = padded_b // tile_b

    # Lane-dense (3, padded_B) input: batch on the lane axis. Transpose/pad in
    # the wrapper (layout plumbing), not in-kernel.
    x_t = jnp.zeros((F, padded_b), dtype=jnp.float32).at[:, :B].set(x.T)

    out_t = pl.pallas_call(
        _linear_kernel,
        out_shape=jax.ShapeDtypeStruct((1, padded_b), jnp.float32),
        grid_spec=pltpu.PrefetchScalarGridSpec(
            num_scalar_prefetch=0,
            grid=(n_tiles,),
            in_specs=[
                # 4 parameter scalars -> SMEM (no VMEM tiles, no extra DMAs).
                pl.BlockSpec(memory_space=pltpu.MemorySpace.SMEM),  # weight (3,)
                pl.BlockSpec(memory_space=pltpu.MemorySpace.SMEM),  # bias   (1,)
                # Streamed, double-buffered lane-dense batch tiles.
                pl.BlockSpec((F, tile_b), lambda i: (0, i)),
            ],
            out_specs=pl.BlockSpec((1, tile_b), lambda i: (0, i)),
        ),
        compiler_params=pltpu.CompilerParams(
            dimension_semantics=("parallel",)),   # megacore-shardable on v7x
        cost_estimate=pl.CostEstimate(
            flops=6 * padded_b,
            transcendentals=0,
            bytes_accessed=(3 * padded_b + padded_b) * 4 + 16),
    )(w, b, x_t)

    # Drop padding, return PyTorch-shaped (B, 1).
    return out_t[:, :B].T


if __name__ == "__main__":
    key = jax.random.PRNGKey(0)
    kx, kw, kb = jax.random.split(key, 3)

    # Small shapes consistent with nn.Linear(3, 1): batch=8, in_features=3.
    B = 8
    x = jax.random.normal(kx, (B, 3), dtype=jnp.float32)
    weight = jax.random.normal(kw, (1, 3), dtype=jnp.float32) * 0.1  # (out, in)
    bias = jax.random.normal(kb, (1,), dtype=jnp.float32) * 0.1      # (out,)

    out = multivariate_linear_regression(x, weight, bias)
    out = jax.block_until_ready(out)
    ref = x @ weight.T + bias
    assert out.shape == (B, 1)
    assert jnp.allclose(out, ref, atol=1e-5, rtol=1e-5), "mismatch vs reference (B=8)"

    # Also exercise the multi-tile / padded path (B not a multiple of TILE_B).
    B2 = 1000
    x2 = jax.random.normal(kx, (B2, 3), dtype=jnp.float32)
    out2 = jax.block_until_ready(multivariate_linear_regression(x2, weight, bias))
    ref2 = x2 @ weight.T + bias
    assert out2.shape == (B2, 1)
    assert jnp.allclose(out2, ref2, atol=1e-5, rtol=1e-5), "mismatch vs reference (B=1000)"

    print("KERNEL_OK")
</pallas_src>

<mosaic_0001>
module attributes {stable_mosaic.version = 11 : i64} {
  func.func @_linear_kernel(%arg0: i32, %arg1: memref<3xf32, #tpu.memory_space<smem>>, %arg2: memref<1xf32, #tpu.memory_space<smem>>, %arg3: memref<3x128xf32, #tpu.memory_space<vmem>>, %arg4: memref<1x128xf32, #tpu.memory_space<vmem>>) attributes {dimension_semantics = [#tpu.dimension_semantics<parallel>], iteration_bounds = array<i64: 1>, scalar_prefetch = 0 : i64, scratch_operands = 0 : i64, tpu.core_type = #tpu.core_type<tc>, window_params = [{transform_indices = @transform_0, window_bounds = array<i64: 3>}, {transform_indices = @transform_1, window_bounds = array<i64: 1>}, {transform_indices = @transform_2, window_bounds = array<i64: 3, 128>}, {transform_indices = @transform_3, window_bounds = array<i64: 1, 128>}]} {
    %c0 = arith.constant 0 : index
    %0 = memref.load %arg1[%c0] : memref<3xf32, #tpu.memory_space<smem>>
    %c1 = arith.constant 1 : index
    %1 = memref.load %arg1[%c1] : memref<3xf32, #tpu.memory_space<smem>>
    %c2 = arith.constant 2 : index
    %2 = memref.load %arg1[%c2] : memref<3xf32, #tpu.memory_space<smem>>
    %c0_0 = arith.constant 0 : index
    %3 = memref.load %arg2[%c0_0] : memref<1xf32, #tpu.memory_space<smem>>
    %c0_1 = arith.constant 0 : index
    %c0_2 = arith.constant 0 : index
    %4 = vector.load %arg3[%c0_1, %c0_2] : memref<3x128xf32, #tpu.memory_space<vmem>>, vector<1x128xf32>
    %5 = vector.broadcast %0 : f32 to vector<1x128xf32>
    %6 = arith.mulf %5, %4 : vector<1x128xf32>
    %c1_3 = arith.constant 1 : index
    %c0_4 = arith.constant 0 : index
    %7 = vector.load %arg3[%c1_3, %c0_4] : memref<3x128xf32, #tpu.memory_space<vmem>>, vector<1x128xf32>
    %8 = vector.broadcast %1 : f32 to vector<1x128xf32>
    %9 = arith.mulf %8, %7 : vector<1x128xf32>
    %10 = arith.addf %6, %9 : vector<1x128xf32>
    %c2_5 = arith.constant 2 : index
    %c0_6 = arith.constant 0 : index
    %11 = vector.load %arg3[%c2_5, %c0_6] : memref<3x128xf32, #tpu.memory_space<vmem>>, vector<1x128xf32>
    %12 = vector.broadcast %2 : f32 to vector<1x128xf32>
    %13 = arith.mulf %12, %11 : vector<1x128xf32>
    %14 = arith.addf %10, %13 : vector<1x128xf32>
    %15 = vector.broadcast %3 : f32 to vector<1x128xf32>
    %16 = arith.addf %14, %15 : vector<1x128xf32>
    %c0_7 = arith.constant 0 : index
    %c0_8 = arith.constant 0 : index
    %17 = vector.load %arg4[%c0_7, %c0_8] : memref<1x128xf32, #tpu.memory_space<vmem>>, vector<1x128xf32>
    tpu.vector_store %arg4[%c0_7, %c0_8], %16 {strides = array<i32>} : memref<1x128xf32, #tpu.memory_space<vmem>>, vector<1x128xf32>,
    return
  }
  func.func @transform_0(%arg0: i32) -> i32 {
    %c0_i32 = arith.constant 0 : i32
    %c0_i32_0 = arith.constant 0 : i32
    return %c0_i32 : i32
  }
  func.func @transform_1(%arg0: i32) -> i32 {
    %c0_i32 = arith.constant 0 : i32
    %c0_i32_0 = arith.constant 0 : i32
    return %c0_i32 : i32
  }
  func.func @transform_2(%arg0: i32) -> (i32, i32) {
    %c0_i32 = arith.constant 0 : i32
    %c0_i32_0 = arith.constant 0 : i32
    return %c0_i32, %arg0 : i32, i32
  }
  func.func @transform_3(%arg0: i32) -> (i32, i32) {
    %c0_i32 = arith.constant 0 : i32
    %c0_i32_0 = arith.constant 0 : i32
    return %c0_i32, %arg0 : i32, i32
  }
}

</mosaic_0001>

<llo_original>
// kernel: tpu_custom_call.1
$region0: #{tpu_custom_call.1}
  #allocation0 [shape = 'u32[]', space=smem, size = 0x4, offset = 0x4, fixed_abs, tag = 'smem constant byte address 0x4 - core index']
  #allocation1 [shape = 'u32[72,128]{1,0:T(1,128)}', space=vmem, size = 0x9000, scoped, tag = 'internal scratch']
  #allocation2 [shape = 'f32[1]{0:T(128)S(6)}', space=smem, size = 0x200, scoped, tag = 'scoped memory for tpu_custom_call.1']
  %s0 = inlined_call_operand.vmem [shape: f32[3], index: 0, kind: input, shape index: {}]
  %s1 = inlined_call_operand.<no memory space> [shape: f32[1], index: 1, kind: input, shape index: {}]
  %s2 = inlined_call_operand.hbm [shape: f32[3,128], index: 2, kind: input, shape index: {}]
  %s3 = inlined_call_operand.hbm [shape: f32[1,128], index: 3, kind: output, shape index: {}]
  %s4 = sld [smem:[#allocation0]]
  $region30: #{tpu_custom_call.1} parent=0
    _
  %s6 = ssub.s32 1, %s4
  %s7 = scalar_select 0, %s6, %s4
  %8 = sst [smem:[#allocation2]] %s1
  $region1: #{tpu_custom_call.1} parent=0
    #allocation3 [shape = 'u8[512]{0}', space=smem, size = 0x200, scoped, tag = 'input window, operand 0, single buffered']
    #allocation4 [shape = 's32[1]{0}', space=sflag, size = 0x4, scoped, tag = 'scoped memory for tpu_custom_call.1']
    #allocation5 [shape = 's32[1]{0}', space=sflag, size = 0x4, scoped, tag = 'scoped memory for tpu_custom_call.1']
    #allocation6 [shape = 's32[1]{0}', space=sflag, size = 0x4, scoped, tag = 'scoped memory for tpu_custom_call.1']
    #allocation7 [shape = 'u8[2048]{0}', space=vmem, size = 0x800, scoped, tag = 'input window, operand 2, single buffered']
    #allocation8 [shape = 'u8[512]{0}', space=vmem, size = 0x400, scoped, tag = 'output window, operand 0, single buffered']
    %9 = vsyncpa [#allocation6], 0
    %10 = vsyncpa [#allocation4], 0
    %11 = vsyncpa [#allocation5], 0
    // Predicated region
    $region2: #{tpu_custom_call.1} parent=1 // pred_check
      _
    $region3: #{tpu_custom_call.1} parent=1 // pred_check_branch
      %13 = sbr.rel (0) target = $region5
    $region4: #{tpu_custom_call.1} parent=1 // pred_region
      %15 = vsyncadd [#allocation6], 0
      %s17 = sshll.u32 %s0, 4
      %s18 = int_to_ptr.vmem [resolvable:$true] %s17
      %20 = dma.vmem_to_smem %s18, 16, [#allocation3], [#allocation6]
    $region5: #{tpu_custom_call.1} parent=1 // pred_fallthru
      _
    // Predicated region
    $region6: #{tpu_custom_call.1} parent=1 // pred_check
      _
    $region7: #{tpu_custom_call.1} parent=1 // pred_check_branch
      %22 = sbr.rel (0) target = $region9
    $region8: #{tpu_custom_call.1} parent=1 // pred_region
      _
    $region9: #{tpu_custom_call.1} parent=1 // pred_fallthru
      _
    // Predicated region
    $region10: #{tpu_custom_call.1} parent=1 // pred_check
      _
    $region11: #{tpu_custom_call.1} parent=1 // pred_check_branch
      %24 = sbr.rel (0) target = $region13
    $region12: #{tpu_custom_call.1} parent=1 // pred_region
      %26 = vsyncadd [#allocation4], 0
      %s28 = sshll.u32 %s2, 4
      %s29 = int_to_ptr.hbm [resolvable:$true] %s28
      %s30 = sshll.u32 [#allocation7], 4
      %s31 = int_to_ptr.vmem [resolvable:$true] %s30
      %33 = dma.hbm_to_vmem [thread:$0]  %s29, 64, %s31, [#allocation4]
    $region13: #{tpu_custom_call.1} parent=1 // pred_fallthru
      _
    // Predicated region
    $region14: #{tpu_custom_call.1} parent=1 // pred_check
      _
    $region15: #{tpu_custom_call.1} parent=1 // pred_check_branch
      %35 = sbr.rel (0) target = $region17
    $region16: #{tpu_custom_call.1} parent=1 // pred_region
      %37 = dma.done [#allocation6], 16
    $region17: #{tpu_custom_call.1} parent=1 // pred_fallthru
      _
    // Predicated region
    $region18: #{tpu_custom_call.1} parent=1 // pred_check
      _
    $region19: #{tpu_custom_call.1} parent=1 // pred_check_branch
      %39 = sbr.rel (0) target = $region21
    $region20: #{tpu_custom_call.1} parent=1 // pred_region
      %41 = dma.done [#allocation4], 64
    $region21: #{tpu_custom_call.1} parent=1 // pred_fallthru
      _
    %42 = sfence
    %s43 = sld [smem:[#allocation3]]
    %s44 = sld [smem:[#allocation3 + $0x1]]
    %s45 = sld [smem:[#allocation3 + $0x2]]
    %s46 = sld [smem:[#allocation2]]
    %v47 = vld [vmem:[#allocation7] sm:$0x1]
    %v48 = vstv %s43
    %v49 = vmul.f32 %v48, %v47
    %v50 = vld [vmem:[#allocation7 + $0x1] sm:$0x1]
    %v51 = vstv %s44
    %v52 = vmul.f32 %v51, %v50
    %v53 = vadd.f32 %v49, %v52
    %v54 = vld [vmem:[#allocation7 + $0x2] sm:$0x1]
    %v55 = vstv %s45
    %v56 = vmul.f32 %v55, %v54
    %v57 = vadd.f32 %v53, %v56
    %v58 = vstv %s46
    %v59 = vadd.f32 %v57, %v58
    %60 = vst [vmem:[#allocation8] sm:$0x1] %v59
    // Predicated region
    $region22: #{tpu_custom_call.1} parent=1 // pred_check
      _
    $region23: #{tpu_custom_call.1} parent=1 // pred_check_branch
      %62 = sbr.rel (0) target = $region25
    $region24: #{tpu_custom_call.1} parent=1 // pred_region
      %64 = vsyncadd [#allocation5], 0
      %s66 = sshll.u32 [#allocation8], 4
      %s67 = int_to_ptr.vmem [resolvable:$true] %s66
      %s68 = sshll.u32 %s3, 4
      %s69 = int_to_ptr.hbm [resolvable:$true] %s68
      %71 = dma.vmem_to_hbm [thread:$0]  %s67, 16, %s69, [#allocation5]
    $region25: #{tpu_custom_call.1} parent=1 // pred_fallthru
      _
    // Predicated region
    $region26: #{tpu_custom_call.1} parent=1 // pred_check
      _
    $region27: #{tpu_custom_call.1} parent=1 // pred_check_branch
      %73 = sbr.rel (0) target = $region29
    $region28: #{tpu_custom_call.1} parent=1 // pred_region
      %75 = dma.done [#allocation5], 16
    $region29: #{tpu_custom_call.1} parent=1 // pred_fallthru
      _
    %76 = vsyncpa [#allocation4], 1
    %77 = vsyncpa [#allocation5], 1
    %78 = vsyncpa [#allocation6], 1

</llo_original>
